<compile_context>
chip_gen: v7x
topology: tpu7x:2x2x1
jax: 0.10.0
libtpu: 0.0.40
codegen_flags: <defaults>
</compile_context>

<pallas_src>
import functools

import numpy as np

import jax
import jax.numpy as jnp
from jax.experimental import pallas as pl
from jax.experimental.pallas import tpu as pltpu


def _cnn_res_block_kernel(x_ref, cm1_ref, cm2_ref, hm_ref, w1_ref, t1_ref,
                          w2_ref, t2_ref, o_ref, *, shifts, oxs, img_w,
                          strip_rows, pad):
    # x_ref : (Cp, Lin)   input strip (with 2*pad-row halo on each side)
    # cm*_ref: (K*K, 1, L) per-tap column-validity masks (input dtype)
    # hm_ref: (1, Lmid)   per-strip row-validity mask for h (f32)
    # w*_ref: (Cp, K*K*Cp) BN-scale-folded, tap-stacked weights
    # t*_ref: (Cp, 1)     f32 folded BatchNorm shift (+ conv bias)
    x = x_ref[...]
    p_w = pad * img_w
    l_mid = (strip_rows + 2 * pad) * img_w
    l_out = strip_rows * img_w

    def conv(v, m_ref, w_ref):
        # Build all K*K taps (lane-rolled, column-masked), stack them along
        # sublanes and do ONE MXU matmul with a K*K*Cp contraction dim.
        taps = []
        for t, (s, ox) in enumerate(zip(shifts, oxs)):
            tap = v if s == 0 else jnp.roll(v, -s, axis=1)
            if ox != 0:
                tap = tap * m_ref[t]          # zero column-crossing neighbours
            taps.append(tap)
        stacked = jnp.concatenate(taps, axis=0)             # (K*K*Cp, L)
        return jnp.dot(w_ref[...], stacked,
                       preferred_element_type=jnp.float32)  # (Cp, L) f32

    # conv1 (BN1 scale folded into w1) -> +shift -> ReLU -> zero rows outside
    # the real image (SAME zero padding of h for conv2).  Dropout2d(p=0) = id.
    c1 = conv(x, cm1_ref, w1_ref)
    h = jnp.maximum(c1[:, p_w:p_w + l_mid] + t1_ref[...], 0.0) * hm_ref[...]
    h = h.astype(x.dtype)

    # conv2 (BN2 scale folded) -> +shift -> residual add -> ReLU.
    c2 = conv(h, cm2_ref, w2_ref)
    x_res = x[:, 2 * p_w:2 * p_w + l_out].astype(jnp.float32)
    out = jnp.maximum(c2[:, p_w:p_w + l_out] + t2_ref[...] + x_res, 0.0)
    o_ref[...] = out.astype(o_ref.dtype)


def _col_masks(length, img_w, k, pad, dtype):
    col = np.arange(length) % img_w
    m = np.ones((k * k, 1, length), np.float32)
    for dy in range(k):
        for dx in range(k):
            ox = dx - pad
            if ox != 0:
                m[dy * k + dx, 0, :] = ((col + ox >= 0) &
                                        (col + ox < img_w)).astype(np.float32)
    return jnp.asarray(m, dtype=dtype)


def _pick_strip_rows(H, W, Cp, itemsize, pad):
    for r in range(H, 0, -1):
        if H % r:
            continue
        if r * W <= 2048 and Cp * (r + 4 * pad) * W * itemsize <= (2 << 20):
            return r
    return 1


def cnn_res_block(x, w1, bn1_scale, bn1_shift, w2, bn2_scale, bn2_shift,
                  *, strip_rows=None):
    """x: (N, C, H, W) NCHW.  w1, w2: (C, C, K, K) PyTorch Conv2d layout.
    bn*_scale / bn*_shift: (C,) folded inference-mode BatchNorm affine
    (scale = gamma/sqrt(var+eps); shift = beta + (conv_bias - mean)*scale)."""
    N, C, H, W = x.shape
    k = w1.shape[-1]
    p = k // 2
    kk = k * k
    dt = x.dtype
    isz = jnp.dtype(dt).itemsize
    Cp = max(8, -(-C // 8) * 8)                      # pad channels to sublanes

    if strip_rows is None:
        strip_rows = _pick_strip_rows(H, W, Cp, isz, p)
    R = int(strip_rows)
    assert H % R == 0, "strip_rows must divide H"
    S = H // R
    Lin = (R + 4 * p) * W
    Lmid = (R + 2 * p) * W
    Lout = R * W

    # ---- host-side prep -------------------------------------------------
    # Channel pad + row zero-pad (2*pad halo each side), then gather halo'd
    # row strips so every grid block is a plain rectangular BlockSpec tile.
    x_p = jnp.pad(x, ((0, 0), (0, Cp - C), (0, 0), (0, 0)))
    x_pr = jnp.pad(x_p, ((0, 0), (0, 0), (2 * p, 2 * p), (0, 0)))
    row_idx = jnp.arange(S)[:, None] * R + jnp.arange(R + 4 * p)[None, :]
    x_strips = x_pr[:, :, row_idx, :]                        # (N,Cp,S,R+4p,W)
    x_strips = jnp.transpose(x_strips, (0, 2, 1, 3, 4)).reshape(N, S, Cp, Lin)

    # Fold BN scale into conv weights (f32), pad channels, stack taps:
    # W_stk[o, t*Cp + i] = scale[o] * w[o, i, dy, dx],  t = dy*k + dx.
    def stack_weights(w, scale):
        wf = w.astype(jnp.float32) * scale.astype(jnp.float32)[:, None, None, None]
        wt = jnp.transpose(wf, (2, 3, 0, 1)).reshape(kk, C, C)
        wt = jnp.pad(wt, ((0, 0), (0, Cp - C), (0, Cp - C)))
        return jnp.transpose(wt, (1, 0, 2)).reshape(Cp, kk * Cp).astype(dt)

    w1s = stack_weights(w1, bn1_scale)
    w2s = stack_weights(w2, bn2_scale)
    t1 = jnp.pad(bn1_shift.astype(jnp.float32), (0, Cp - C)).reshape(Cp, 1)
    t2 = jnp.pad(bn2_shift.astype(jnp.float32), (0, Cp - C)).reshape(Cp, 1)

    # Per-tap column masks (periodic in W, strip independent).
    cm1 = _col_masks(Lin, W, k, p, dt)
    cm2 = _col_masks(Lmid, W, k, p, dt)

    # Per-strip row-validity mask for the intermediate h (real rows only).
    hm = np.zeros((S, 1, Lmid), np.float32)
    for s in range(S):
        rows = s * R - p + np.arange(R + 2 * p)
        hm[s, 0, :] = np.repeat(((rows >= 0) & (rows < H)).astype(np.float32), W)
    hm = jnp.asarray(hm)

    # Static flat shifts + column offsets per tap.
    shifts, oxs = [], []
    for dy in range(k):
        for dx in range(k):
            shifts.append((dy - p) * W + (dx - p))
            oxs.append(dx - p)

    kernel = functools.partial(_cnn_res_block_kernel, shifts=tuple(shifts),
                               oxs=tuple(oxs), img_w=W, strip_rows=R, pad=p)

    # VMEM budget: double-buffered blocks + resident constants + working set.
    est = (2 * Cp * (Lin + Lout) * isz
           + 2 * (kk * (Lin + Lmid) * isz + Lmid * 4)
           + 2 * (2 * Cp * kk * Cp * isz + 2 * Cp * 4)
           + 2 * kk * Cp * Lin * isz
           + 6 * Cp * Lin * 4)
    vmem_limit = int(min(max(2 * est, 32 * 2 ** 20), 48 * 2 ** 20))

    out_strips = pl.pallas_call(
        kernel,
        out_shape=jax.ShapeDtypeStruct((N, S, Cp, Lout), dt),
        grid=(N, S),
        in_specs=[
            pl.BlockSpec((None, None, Cp, Lin), lambda n, s: (n, s, 0, 0)),
            pl.BlockSpec((kk, 1, Lin), lambda n, s: (0, 0, 0)),   # col masks 1
            pl.BlockSpec((kk, 1, Lmid), lambda n, s: (0, 0, 0)),  # col masks 2
            pl.BlockSpec((None, 1, Lmid), lambda n, s: (s, 0, 0)),  # h row mask
            pl.BlockSpec((Cp, kk * Cp), lambda n, s: (0, 0)),     # w1 (folded)
            pl.BlockSpec((Cp, 1), lambda n, s: (0, 0)),           # bn1 shift
            pl.BlockSpec((Cp, kk * Cp), lambda n, s: (0, 0)),     # w2 (folded)
            pl.BlockSpec((Cp, 1), lambda n, s: (0, 0)),           # bn2 shift
        ],
        out_specs=pl.BlockSpec((None, None, Cp, Lout), lambda n, s: (n, s, 0, 0)),
        compiler_params=pltpu.CompilerParams(
            dimension_semantics=("parallel", "parallel"),
            vmem_limit_bytes=vmem_limit),
    )(x_strips, cm1, cm2, hm, w1s, t1, w2s, t2)

    out = out_strips.reshape(N, S, Cp, R, W)
    out = jnp.transpose(out, (0, 2, 1, 3, 4)).reshape(N, Cp, H, W)
    return out[:, :C]


def _reference(x, w1, b1, g1, be1, mu1, v1, w2, b2, g2, be2, mu2, v2, eps):
    def conv(v, w, b):
        y = jax.lax.conv_general_dilated(
            v, w, window_strides=(1, 1), padding="SAME",
            dimension_numbers=("NCHW", "OIHW", "NCHW"),
            precision=jax.lax.Precision.HIGHEST)
        return y + b[None, :, None, None]

    def bn(y, g, be, mu, var):
        sc = (g / jnp.sqrt(var + eps))[None, :, None, None]
        return (y - mu[None, :, None, None]) * sc + be[None, :, None, None]

    h = jnp.maximum(bn(conv(x, w1, b1), g1, be1, mu1, v1), 0.0)
    out = bn(conv(h, w2, b2), g2, be2, mu2, v2)
    return jnp.maximum(out + x, 0.0)


if __name__ == "__main__":
    batch, channels, height, width, ksize = 2, 4, 16, 16, 3

    key = jax.random.PRNGKey(0)
    (kx, kw1, kb1, kw2, kb2, kg1, kbe1, km1, kv1,
     kg2, kbe2, km2, kv2) = jax.random.split(key, 13)

    x = jax.random.normal(kx, (batch, channels, height, width), jnp.float32)

    fan_in = channels * ksize * ksize
    bound = 1.0 / np.sqrt(fan_in)
    w1 = jax.random.uniform(kw1, (channels, channels, ksize, ksize),
                            minval=-bound, maxval=bound, dtype=jnp.float32)
    b1 = jax.random.uniform(kb1, (channels,), minval=-bound, maxval=bound,
                            dtype=jnp.float32)
    w2 = jax.random.uniform(kw2, (channels, channels, ksize, ksize),
                            minval=-bound, maxval=bound, dtype=jnp.float32)
    b2 = jax.random.uniform(kb2, (channels,), minval=-bound, maxval=bound,
                            dtype=jnp.float32)

    eps = 1e-5
    gamma1 = 1.0 + 0.1 * jax.random.normal(kg1, (channels,), jnp.float32)
    beta1 = 0.1 * jax.random.normal(kbe1, (channels,), jnp.float32)
    mean1 = 0.1 * jax.random.normal(km1, (channels,), jnp.float32)
    var1 = jnp.abs(1.0 + 0.1 * jax.random.normal(kv1, (channels,), jnp.float32))
    gamma2 = 1.0 + 0.1 * jax.random.normal(kg2, (channels,), jnp.float32)
    beta2 = 0.1 * jax.random.normal(kbe2, (channels,), jnp.float32)
    mean2 = 0.1 * jax.random.normal(km2, (channels,), jnp.float32)
    var2 = jnp.abs(1.0 + 0.1 * jax.random.normal(kv2, (channels,), jnp.float32))

    # Fold inference-mode BatchNorm (+ conv bias) to per-channel scale/shift.
    s1 = gamma1 / jnp.sqrt(var1 + eps)
    t1 = beta1 + (b1 - mean1) * s1
    s2 = gamma2 / jnp.sqrt(var2 + eps)
    t2 = beta2 + (b2 - mean2) * s2

    # strip_rows=8 -> 2 halo'd row strips per image (exercises the tiling).
    out = cnn_res_block(x, w1, s1, t1, w2, s2, t2, strip_rows=8)
    out = jax.block_until_ready(out)

    ref = _reference(x, w1, b1, gamma1, beta1, mean1, var1,
                     w2, b2, gamma2, beta2, mean2, var2, eps)
    assert out.shape == x.shape
    # Tolerance allows for MXU pass-precision differences vs the XLA conv.
    assert jnp.allclose(out, ref, atol=2e-2, rtol=2e-2), (
        f"mismatch vs reference: max abs diff {jnp.max(jnp.abs(out - ref))}")

    print("KERNEL_OK")
</pallas_src>

<mosaic_0001>
module attributes {stable_mosaic.version = 11 : i64} {
  func.func @_cnn_res_block_kernel(%arg0: i32, %arg1: i32, %arg2: memref<1x1x8x192xf32, #tpu.memory_space<vmem>>, %arg3: memref<9x1x192xf32, #tpu.memory_space<vmem>>, %arg4: memref<9x1x160xf32, #tpu.memory_space<vmem>>, %arg5: memref<1x1x160xf32, #tpu.memory_space<vmem>>, %arg6: memref<8x72xf32, #tpu.memory_space<vmem>>, %arg7: memref<8x1xf32, #tpu.memory_space<vmem>>, %arg8: memref<8x72xf32, #tpu.memory_space<vmem>>, %arg9: memref<8x1xf32, #tpu.memory_space<vmem>>, %arg10: memref<1x1x8x128xf32, #tpu.memory_space<vmem>>) attributes {dimension_semantics = [#tpu.dimension_semantics<parallel>, #tpu.dimension_semantics<parallel>], iteration_bounds = array<i64: 2, 2>, scalar_prefetch = 0 : i64, scratch_operands = 0 : i64, tpu.core_type = #tpu.core_type<tc>, window_params = [{transform_indices = @transform_0, window_bounds = array<i64: 1, 1, 8, 192>}, {pipeline_mode = #tpu.pipeline_mode<synchronous>, transform_indices = @transform_1, window_bounds = array<i64: 9, 1, 192>}, {pipeline_mode = #tpu.pipeline_mode<synchronous>, transform_indices = @transform_2, window_bounds = array<i64: 9, 1, 160>}, {transform_indices = @transform_3, window_bounds = array<i64: 1, 1, 160>}, {pipeline_mode = #tpu.pipeline_mode<synchronous>, transform_indices = @transform_4, window_bounds = array<i64: 8, 72>}, {pipeline_mode = #tpu.pipeline_mode<synchronous>, transform_indices = @transform_5, window_bounds = array<i64: 8, 1>}, {pipeline_mode = #tpu.pipeline_mode<synchronous>, transform_indices = @transform_6, window_bounds = array<i64: 8, 72>}, {pipeline_mode = #tpu.pipeline_mode<synchronous>, transform_indices = @transform_7, window_bounds = array<i64: 8, 1>}, {transform_indices = @transform_8, window_bounds = array<i64: 1, 1, 8, 128>}]} {
    %c0 = arith.constant 0 : index
    %c0_0 = arith.constant 0 : index
    %c0_1 = arith.constant 0 : index
    %c0_2 = arith.constant 0 : index
    %0 = vector.load %arg2[%c0, %c0_0, %c0_1, %c0_2] : memref<1x1x8x192xf32, #tpu.memory_space<vmem>>, vector<1x1x8x192xf32>
    %1 = vector.shape_cast %0 : vector<1x1x8x192xf32> to vector<8x192xf32>
    %2 = vector.extract_strided_slice %1 {offsets = [0, 175], sizes = [8, 17], strides = [1, 1]} : vector<8x192xf32> to vector<8x17xf32>
    %3 = vector.extract_strided_slice %1 {offsets = [0, 0], sizes = [8, 175], strides = [1, 1]} : vector<8x192xf32> to vector<8x175xf32>
    %4 = tpu.concatenate %2, %3 in 1 : vector<8x17xf32>, vector<8x175xf32> -> vector<8x192xf32>
    %c0_3 = arith.constant 0 : index
    %c0_4 = arith.constant 0 : index
    %c0_5 = arith.constant 0 : index
    %5 = vector.load %arg3[%c0_3, %c0_4, %c0_5] : memref<9x1x192xf32, #tpu.memory_space<vmem>>, vector<1x1x192xf32>
    %6 = vector.shape_cast %5 : vector<1x1x192xf32> to vector<1x192xf32>
    %7 = vector.broadcast %6 : vector<1x192xf32> to vector<8x192xf32>
    %8 = arith.mulf %4, %7 : vector<8x192xf32>
    %9 = vector.extract_strided_slice %1 {offsets = [0, 176], sizes = [8, 16], strides = [1, 1]} : vector<8x192xf32> to vector<8x16xf32>
    %10 = vector.extract_strided_slice %1 {offsets = [0, 0], sizes = [8, 176], strides = [1, 1]} : vector<8x192xf32> to vector<8x176xf32>
    %11 = tpu.concatenate %9, %10 in 1 : vector<8x16xf32>, vector<8x176xf32> -> vector<8x192xf32>
    %12 = vector.extract_strided_slice %1 {offsets = [0, 177], sizes = [8, 15], strides = [1, 1]} : vector<8x192xf32> to vector<8x15xf32>
    %13 = vector.extract_strided_slice %1 {offsets = [0, 0], sizes = [8, 177], strides = [1, 1]} : vector<8x192xf32> to vector<8x177xf32>
    %14 = tpu.concatenate %12, %13 in 1 : vector<8x15xf32>, vector<8x177xf32> -> vector<8x192xf32>
    %c2 = arith.constant 2 : index
    %c0_6 = arith.constant 0 : index
    %c0_7 = arith.constant 0 : index
    %15 = vector.load %arg3[%c2, %c0_6, %c0_7] : memref<9x1x192xf32, #tpu.memory_space<vmem>>, vector<1x1x192xf32>
    %16 = vector.shape_cast %15 : vector<1x1x192xf32> to vector<1x192xf32>
    %17 = vector.broadcast %16 : vector<1x192xf32> to vector<8x192xf32>
    %18 = arith.mulf %14, %17 : vector<8x192xf32>
    %19 = vector.extract_strided_slice %1 {offsets = [0, 191], sizes = [8, 1], strides = [1, 1]} : vector<8x192xf32> to vector<8x1xf32>
    %20 = vector.extract_strided_slice %1 {offsets = [0, 0], sizes = [8, 191], strides = [1, 1]} : vector<8x192xf32> to vector<8x191xf32>
    %21 = tpu.concatenate %19, %20 in 1 : vector<8x1xf32>, vector<8x191xf32> -> vector<8x192xf32>
    %c3 = arith.constant 3 : index
    %c0_8 = arith.constant 0 : index
    %c0_9 = arith.constant 0 : index
    %22 = vector.load %arg3[%c3, %c0_8, %c0_9] : memref<9x1x192xf32, #tpu.memory_space<vmem>>, vector<1x1x192xf32>
    %23 = vector.shape_cast %22 : vector<1x1x192xf32> to vector<1x192xf32>
    %24 = vector.broadcast %23 : vector<1x192xf32> to vector<8x192xf32>
    %25 = arith.mulf %21, %24 : vector<8x192xf32>
    %26 = vector.extract_strided_slice %1 {offsets = [0, 1], sizes = [8, 191], strides = [1, 1]} : vector<8x192xf32> to vector<8x191xf32>
    %27 = vector.extract_strided_slice %1 {offsets = [0, 0], sizes = [8, 1], strides = [1, 1]} : vector<8x192xf32> to vector<8x1xf32>
    %28 = tpu.concatenate %26, %27 in 1 : vector<8x191xf32>, vector<8x1xf32> -> vector<8x192xf32>
    %c5 = arith.constant 5 : index
    %c0_10 = arith.constant 0 : index
    %c0_11 = arith.constant 0 : index
    %29 = vector.load %arg3[%c5, %c0_10, %c0_11] : memref<9x1x192xf32, #tpu.memory_space<vmem>>, vector<1x1x192xf32>
    %30 = vector.shape_cast %29 : vector<1x1x192xf32> to vector<1x192xf32>
    %31 = vector.broadcast %30 : vector<1x192xf32> to vector<8x192xf32>
    %32 = arith.mulf %28, %31 : vector<8x192xf32>
    %33 = vector.extract_strided_slice %1 {offsets = [0, 15], sizes = [8, 177], strides = [1, 1]} : vector<8x192xf32> to vector<8x177xf32>
    %34 = vector.extract_strided_slice %1 {offsets = [0, 0], sizes = [8, 15], strides = [1, 1]} : vector<8x192xf32> to vector<8x15xf32>
    %35 = tpu.concatenate %33, %34 in 1 : vector<8x177xf32>, vector<8x15xf32> -> vector<8x192xf32>
    %c6 = arith.constant 6 : index
    %c0_12 = arith.constant 0 : index
    %c0_13 = arith.constant 0 : index
    %36 = vector.load %arg3[%c6, %c0_12, %c0_13] : memref<9x1x192xf32, #tpu.memory_space<vmem>>, vector<1x1x192xf32>
    %37 = vector.shape_cast %36 : vector<1x1x192xf32> to vector<1x192xf32>
    %38 = vector.broadcast %37 : vector<1x192xf32> to vector<8x192xf32>
    %39 = arith.mulf %35, %38 : vector<8x192xf32>
    %40 = vector.extract_strided_slice %1 {offsets = [0, 16], sizes = [8, 176], strides = [1, 1]} : vector<8x192xf32> to vector<8x176xf32>
    %41 = vector.extract_strided_slice %1 {offsets = [0, 0], sizes = [8, 16], strides = [1, 1]} : vector<8x192xf32> to vector<8x16xf32>
    %42 = tpu.concatenate %40, %41 in 1 : vector<8x176xf32>, vector<8x16xf32> -> vector<8x192xf32>
    %43 = vector.extract_strided_slice %1 {offsets = [0, 17], sizes = [8, 175], strides = [1, 1]} : vector<8x192xf32> to vector<8x175xf32>
    %44 = vector.extract_strided_slice %1 {offsets = [0, 0], sizes = [8, 17], strides = [1, 1]} : vector<8x192xf32> to vector<8x17xf32>
    %45 = tpu.concatenate %43, %44 in 1 : vector<8x175xf32>, vector<8x17xf32> -> vector<8x192xf32>
    %c8 = arith.constant 8 : index
    %c0_14 = arith.constant 0 : index
    %c0_15 = arith.constant 0 : index
    %46 = vector.load %arg3[%c8, %c0_14, %c0_15] : memref<9x1x192xf32, #tpu.memory_space<vmem>>, vector<1x1x192xf32>
    %47 = vector.shape_cast %46 : vector<1x1x192xf32> to vector<1x192xf32>
    %48 = vector.broadcast %47 : vector<1x192xf32> to vector<8x192xf32>
    %49 = arith.mulf %45, %48 : vector<8x192xf32>
    %50 = tpu.concatenate %8, %11, %18, %25, %1, %32, %39, %42, %49 in 0 : vector<8x192xf32>, vector<8x192xf32>, vector<8x192xf32>, vector<8x192xf32>, vector<8x192xf32>, vector<8x192xf32>, vector<8x192xf32>, vector<8x192xf32>, vector<8x192xf32> -> vector<72x192xf32>
    %c0_16 = arith.constant 0 : index
    %c0_17 = arith.constant 0 : index
    %51 = vector.load %arg6[%c0_16, %c0_17] : memref<8x72xf32, #tpu.memory_space<vmem>>, vector<8x72xf32>
    %cst = arith.constant dense<0.000000e+00> : vector<8x192xf32>
    %52 = tpu.matmul %51, %50, %cst {dimension_numbers = #tpu.dot_dimension_numbers<[1], [0], [0], [1], [0, 0, 1, 1], [], []>} : vector<8x72xf32>, vector<72x192xf32>, vector<8x192xf32> -> vector<8x192xf32>
    %53 = vector.extract_strided_slice %52 {offsets = [0, 16], sizes = [8, 160], strides = [1, 1]} : vector<8x192xf32> to vector<8x160xf32>
    %c0_18 = arith.constant 0 : index
    %c0_19 = arith.constant 0 : index
    %54 = vector.load %arg7[%c0_18, %c0_19] : memref<8x1xf32, #tpu.memory_space<vmem>>, vector<8x1xf32>
    %55 = vector.broadcast %54 : vector<8x1xf32> to vector<8x160xf32>
    %56 = arith.addf %53, %55 : vector<8x160xf32>
    %cst_20 = arith.constant 0.000000e+00 : f32
    %57 = vector.broadcast %cst_20 : f32 to vector<8x160xf32>
    %58 = arith.maximumf %56, %57 : vector<8x160xf32>
    %c0_21 = arith.constant 0 : index
    %c0_22 = arith.constant 0 : index
    %c0_23 = arith.constant 0 : index
    %59 = vector.load %arg5[%c0_21, %c0_22, %c0_23] : memref<1x1x160xf32, #tpu.memory_space<vmem>>, vector<1x1x160xf32>
    %60 = vector.shape_cast %59 : vector<1x1x160xf32> to vector<1x160xf32>
    %61 = vector.broadcast %60 : vector<1x160xf32> to vector<8x160xf32>
    %62 = arith.mulf %58, %61 : vector<8x160xf32>
    %63 = vector.extract_strided_slice %62 {offsets = [0, 143], sizes = [8, 17], strides = [1, 1]} : vector<8x160xf32> to vector<8x17xf32>
    %64 = vector.extract_strided_slice %62 {offsets = [0, 0], sizes = [8, 143], strides = [1, 1]} : vector<8x160xf32> to vector<8x143xf32>
    %65 = tpu.concatenate %63, %64 in 1 : vector<8x17xf32>, vector<8x143xf32> -> vector<8x160xf32>
    %c0_24 = arith.constant 0 : index
    %c0_25 = arith.constant 0 : index
    %c0_26 = arith.constant 0 : index
    %66 = vector.load %arg4[%c0_24, %c0_25, %c0_26] : memref<9x1x160xf32, #tpu.memory_space<vmem>>, vector<1x1x160xf32>
    %67 = vector.shape_cast %66 : vector<1x1x160xf32> to vector<1x160xf32>
    %68 = vector.broadcast %67 : vector<1x160xf32> to vector<8x160xf32>
    %69 = arith.mulf %65, %68 : vector<8x160xf32>
    %70 = vector.extract_strided_slice %62 {offsets = [0, 144], sizes = [8, 16], strides = [1, 1]} : vector<8x160xf32> to vector<8x16xf32>
    %71 = vector.extract_strided_slice %62 {offsets = [0, 0], sizes = [8, 144], strides = [1, 1]} : vector<8x160xf32> to vector<8x144xf32>
    %72 = tpu.concatenate %70, %71 in 1 : vector<8x16xf32>, vector<8x144xf32> -> vector<8x160xf32>
    %73 = vector.extract_strided_slice %62 {offsets = [0, 145], sizes = [8, 15], strides = [1, 1]} : vector<8x160xf32> to vector<8x15xf32>
    %74 = vector.extract_strided_slice %62 {offsets = [0, 0], sizes = [8, 145], strides = [1, 1]} : vector<8x160xf32> to vector<8x145xf32>
    %75 = tpu.concatenate %73, %74 in 1 : vector<8x15xf32>, vector<8x145xf32> -> vector<8x160xf32>
    %c2_27 = arith.constant 2 : index
    %c0_28 = arith.constant 0 : index
    %c0_29 = arith.constant 0 : index
    %76 = vector.load %arg4[%c2_27, %c0_28, %c0_29] : memref<9x1x160xf32, #tpu.memory_space<vmem>>, vector<1x1x160xf32>
    %77 = vector.shape_cast %76 : vector<1x1x160xf32> to vector<1x160xf32>
    %78 = vector.broadcast %77 : vector<1x160xf32> to vector<8x160xf32>
    %79 = arith.mulf %75, %78 : vector<8x160xf32>
    %80 = vector.extract_strided_slice %62 {offsets = [0, 159], sizes = [8, 1], strides = [1, 1]} : vector<8x160xf32> to vector<8x1xf32>
    %81 = vector.extract_strided_slice %62 {offsets = [0, 0], sizes = [8, 159], strides = [1, 1]} : vector<8x160xf32> to vector<8x159xf32>
    %82 = tpu.concatenate %80, %81 in 1 : vector<8x1xf32>, vector<8x159xf32> -> vector<8x160xf32>
    %c3_30 = arith.constant 3 : index
    %c0_31 = arith.constant 0 : index
    %c0_32 = arith.constant 0 : index
    %83 = vector.load %arg4[%c3_30, %c0_31, %c0_32] : memref<9x1x160xf32, #tpu.memory_space<vmem>>, vector<1x1x160xf32>
    %84 = vector.shape_cast %83 : vector<1x1x160xf32> to vector<1x160xf32>
    %85 = vector.broadcast %84 : vector<1x160xf32> to vector<8x160xf32>
    %86 = arith.mulf %82, %85 : vector<8x160xf32>
    %87 = vector.extract_strided_slice %62 {offsets = [0, 1], sizes = [8, 159], strides = [1, 1]} : vector<8x160xf32> to vector<8x159xf32>
    %88 = vector.extract_strided_slice %62 {offsets = [0, 0], sizes = [8, 1], strides = [1, 1]} : vector<8x160xf32> to vector<8x1xf32>
    %89 = tpu.concatenate %87, %88 in 1 : vector<8x159xf32>, vector<8x1xf32> -> vector<8x160xf32>
    %c5_33 = arith.constant 5 : index
    %c0_34 = arith.constant 0 : index
    %c0_35 = arith.constant 0 : index
    %90 = vector.load %arg4[%c5_33, %c0_34, %c0_35] : memref<9x1x160xf32, #tpu.memory_space<vmem>>, vector<1x1x160xf32>
    %91 = vector.shape_cast %90 : vector<1x1x160xf32> to vector<1x160xf32>
    %92 = vector.broadcast %91 : vector<1x160xf32> to vector<8x160xf32>
    %93 = arith.mulf %89, %92 : vector<8x160xf32>
    %94 = vector.extract_strided_slice %62 {offsets = [0, 15], sizes = [8, 145], strides = [1, 1]} : vector<8x160xf32> to vector<8x145xf32>
    %95 = vector.extract_strided_slice %62 {offsets = [0, 0], sizes = [8, 15], strides = [1, 1]} : vector<8x160xf32> to vector<8x15xf32>
    %96 = tpu.concatenate %94, %95 in 1 : vector<8x145xf32>, vector<8x15xf32> -> vector<8x160xf32>
    %c6_36 = arith.constant 6 : index
    %c0_37 = arith.constant 0 : index
    %c0_38 = arith.constant 0 : index
    %97 = vector.load %arg4[%c6_36, %c0_37, %c0_38] : memref<9x1x160xf32, #tpu.memory_space<vmem>>, vector<1x1x160xf32>
    %98 = vector.shape_cast %97 : vector<1x1x160xf32> to vector<1x160xf32>
    %99 = vector.broadcast %98 : vector<1x160xf32> to vector<8x160xf32>
    %100 = arith.mulf %96, %99 : vector<8x160xf32>
    %101 = vector.extract_strided_slice %62 {offsets = [0, 16], sizes = [8, 144], strides = [1, 1]} : vector<8x160xf32> to vector<8x144xf32>
    %102 = vector.extract_strided_slice %62 {offsets = [0, 0], sizes = [8, 16], strides = [1, 1]} : vector<8x160xf32> to vector<8x16xf32>
    %103 = tpu.concatenate %101, %102 in 1 : vector<8x144xf32>, vector<8x16xf32> -> vector<8x160xf32>
    %104 = vector.extract_strided_slice %62 {offsets = [0, 17], sizes = [8, 143], strides = [1, 1]} : vector<8x160xf32> to vector<8x143xf32>
    %105 = vector.extract_strided_slice %62 {offsets = [0, 0], sizes = [8, 17], strides = [1, 1]} : vector<8x160xf32> to vector<8x17xf32>
    %106 = tpu.concatenate %104, %105 in 1 : vector<8x143xf32>, vector<8x17xf32> -> vector<8x160xf32>
    %c8_39 = arith.constant 8 : index
    %c0_40 = arith.constant 0 : index
    %c0_41 = arith.constant 0 : index
    %107 = vector.load %arg4[%c8_39, %c0_40, %c0_41] : memref<9x1x160xf32, #tpu.memory_space<vmem>>, vector<1x1x160xf32>
    %108 = vector.shape_cast %107 : vector<1x1x160xf32> to vector<1x160xf32>
    %109 = vector.broadcast %108 : vector<1x160xf32> to vector<8x160xf32>
    %110 = arith.mulf %106, %109 : vector<8x160xf32>
    %111 = tpu.concatenate %69, %72, %79, %86, %62, %93, %100, %103, %110 in 0 : vector<8x160xf32>, vector<8x160xf32>, vector<8x160xf32>, vector<8x160xf32>, vector<8x160xf32>, vector<8x160xf32>, vector<8x160xf32>, vector<8x160xf32>, vector<8x160xf32> -> vector<72x160xf32>
    %c0_42 = arith.constant 0 : index
    %c0_43 = arith.constant 0 : index
    %112 = vector.load %arg8[%c0_42, %c0_43] : memref<8x72xf32, #tpu.memory_space<vmem>>, vector<8x72xf32>
    %cst_44 = arith.constant dense<0.000000e+00> : vector<8x160xf32>
    %113 = tpu.matmul %112, %111, %cst_44 {dimension_numbers = #tpu.dot_dimension_numbers<[1], [0], [0], [1], [0, 0, 1, 1], [], []>} : vector<8x72xf32>, vector<72x160xf32>, vector<8x160xf32> -> vector<8x160xf32>
    %114 = vector.extract_strided_slice %1 {offsets = [0, 32], sizes = [8, 128], strides = [1, 1]} : vector<8x192xf32> to vector<8x128xf32>
    %115 = vector.extract_strided_slice %113 {offsets = [0, 16], sizes = [8, 128], strides = [1, 1]} : vector<8x160xf32> to vector<8x128xf32>
    %c0_45 = arith.constant 0 : index
    %c0_46 = arith.constant 0 : index
    %116 = vector.load %arg9[%c0_45, %c0_46] : memref<8x1xf32, #tpu.memory_space<vmem>>, vector<8x1xf32>
    %117 = vector.broadcast %116 : vector<8x1xf32> to vector<8x128xf32>
    %118 = arith.addf %115, %117 : vector<8x128xf32>
    %119 = arith.addf %118, %114 : vector<8x128xf32>
    %cst_47 = arith.constant 0.000000e+00 : f32
    %120 = vector.broadcast %cst_47 : f32 to vector<8x128xf32>
    %121 = arith.maximumf %119, %120 : vector<8x128xf32>
    %c0_48 = arith.constant 0 : index
    %c0_49 = arith.constant 0 : index
    %c0_50 = arith.constant 0 : index
    %c0_51 = arith.constant 0 : index
    %122 = vector.load %arg10[%c0_48, %c0_49, %c0_50, %c0_51] : memref<1x1x8x128xf32, #tpu.memory_space<vmem>>, vector<1x1x8x128xf32>
    %123 = vector.shape_cast %122 : vector<1x1x8x128xf32> to vector<8x128xf32>
    %124 = vector.shape_cast %121 : vector<8x128xf32> to vector<1x1x8x128xf32>
    tpu.vector_store %arg10[%c0_48, %c0_49, %c0_50, %c0_51], %124 {strides = array<i32>} : memref<1x1x8x128xf32, #tpu.memory_space<vmem>>, vector<1x1x8x128xf32>,
    return
  }
  func.func @transform_0(%arg0: i32, %arg1: i32) -> (i32, i32, i32, i32) {
    %c0_i32 = arith.constant 0 : i32
    %c0_i32_0 = arith.constant 0 : i32
    %c0_i32_1 = arith.constant 0 : i32
    return %arg0, %arg1, %c0_i32, %c0_i32_0 : i32, i32, i32, i32
  }
  func.func @transform_1(%arg0: i32, %arg1: i32) -> (i32, i32, i32) {
    %c0_i32 = arith.constant 0 : i32
    %c0_i32_0 = arith.constant 0 : i32
    %c0_i32_1 = arith.constant 0 : i32
    %c0_i32_2 = arith.constant 0 : i32
    return %c0_i32, %c0_i32_0, %c0_i32_1 : i32, i32, i32
  }
  func.func @transform_2(%arg0: i32, %arg1: i32) -> (i32, i32, i32) {
    %c0_i32 = arith.constant 0 : i32
    %c0_i32_0 = arith.constant 0 : i32
    %c0_i32_1 = arith.constant 0 : i32
    %c0_i32_2 = arith.constant 0 : i32
    return %c0_i32, %c0_i32_0, %c0_i32_1 : i32, i32, i32
  }
  func.func @transform_3(%arg0: i32, %arg1: i32) -> (i32, i32, i32) {
    %c0_i32 = arith.constant 0 : i32
    %c0_i32_0 = arith.constant 0 : i32
    %c0_i32_1 = arith.constant 0 : i32
    return %arg1, %c0_i32, %c0_i32_0 : i32, i32, i32
  }
  func.func @transform_4(%arg0: i32, %arg1: i32) -> (i32, i32) {
    %c0_i32 = arith.constant 0 : i32
    %c0_i32_0 = arith.constant 0 : i32
    %c0_i32_1 = arith.constant 0 : i32
    return %c0_i32, %c0_i32_0 : i32, i32
  }
  func.func @transform_5(%arg0: i32, %arg1: i32) -> (i32, i32) {
    %c0_i32 = arith.constant 0 : i32
    %c0_i32_0 = arith.constant 0 : i32
    %c0_i32_1 = arith.constant 0 : i32
    return %c0_i32, %c0_i32_0 : i32, i32
  }
  func.func @transform_6(%arg0: i32, %arg1: i32) -> (i32, i32) {
    %c0_i32 = arith.constant 0 : i32
    %c0_i32_0 = arith.constant 0 : i32
    %c0_i32_1 = arith.constant 0 : i32
    return %c0_i32, %c0_i32_0 : i32, i32
  }
  func.func @transform_7(%arg0: i32, %arg1: i32) -> (i32, i32) {
    %c0_i32 = arith.constant 0 : i32
    %c0_i32_0 = arith.constant 0 : i32
    %c0_i32_1 = arith.constant 0 : i32
    return %c0_i32, %c0_i32_0 : i32, i32
  }
  func.func @transform_8(%arg0: i32, %arg1: i32) -> (i32, i32, i32, i32) {
    %c0_i32 = arith.constant 0 : i32
    %c0_i32_0 = arith.constant 0 : i32
    %c0_i32_1 = arith.constant 0 : i32
    return %arg0, %arg1, %c0_i32, %c0_i32_0 : i32, i32, i32, i32
  }
}

</mosaic_0001>

<llo_original>
// kernel: tpu_custom_call.1
$region0: #{tpu_custom_call.1}
  #allocation0 [shape = 'u32[]', space=smem, size = 0x4, offset = 0x4, fixed_abs, tag = 'smem constant byte address 0x4 - core index']
  #allocation1 [shape = 'u32[144,128]{1,0:T(1,128)}', space=vmem, size = 0x12000, scoped, tag = 'internal scratch']
  %s0 = inlined_call_operand.hbm [shape: f32[2,2,8,192], index: 0, kind: input, shape index: {}]
  %s1 = inlined_call_operand.vmem [shape: f32[9,1,192], index: 1, kind: input, shape index: {}]
  %s2 = inlined_call_operand.hbm [shape: f32[9,1,160], index: 2, kind: input, shape index: {}]
  %s3 = inlined_call_operand.hbm [shape: f32[2,1,160], index: 3, kind: input, shape index: {}]
  %s4 = inlined_call_operand.vmem [shape: f32[8,72], index: 4, kind: input, shape index: {}]
  %s5 = inlined_call_operand.vmem [shape: f32[8,1], index: 5, kind: input, shape index: {}]
  %s6 = inlined_call_operand.vmem [shape: f32[8,72], index: 6, kind: input, shape index: {}]
  %s7 = inlined_call_operand.vmem [shape: f32[8,1], index: 7, kind: input, shape index: {}]
  %s8 = inlined_call_operand.hbm [shape: f32[2,2,8,128], index: 8, kind: output, shape index: {}]
  %s9 = sld [smem:[#allocation0]]
  $region77: #{tpu_custom_call.1} parent=0
    _
  %s11 = ssub.s32 1, %s9
  %s12 = scalar_select 0, %s11, %s9
  $region1: #{tpu_custom_call.1} parent=0
    #allocation2 [shape = 'u8[16384]{0}', space=vmem, size = 0x4000, scoped, tag = 'input window, operand 0']
    #allocation3 [shape = 's32[2]{0}', space=sflag, size = 0x8, scoped, tag = 'scoped memory for tpu_custom_call.1']
    #allocation4 [shape = 's32[2]{0}', space=sflag, size = 0x8, scoped, tag = 'scoped memory for tpu_custom_call.1']
    #allocation5 [shape = 'u8[9216]{0}', space=vmem, size = 0x2400, scoped, tag = 'input window, operand 2, single buffered']
    #allocation6 [shape = 's32[1]{0}', space=sflag, size = 0x4, scoped, tag = 'scoped memory for tpu_custom_call.1']
    #allocation7 [shape = 'u8[2048]{0}', space=vmem, size = 0x800, scoped, tag = 'input window, operand 3']
    #allocation8 [shape = 'u8[8192]{0}', space=vmem, size = 0x2000, scoped, tag = 'output window, operand 0']
    %13 = vsyncpa [#allocation3], 0
    %s14 = scalar_lea.sflag [#allocation3], 1
    %15 = vsyncpa %s14, 0
    %16 = vsyncpa [#allocation6], 0
    %17 = vsyncpa [#allocation4], 0
    %s18 = scalar_lea.sflag [#allocation4], 1
    %19 = vsyncpa %s18, 0
    loop: start=0, step=1, limit=6
    $region2: #{tpu_custom_call.1} parent=1 // loop_pre_header
      _
    $region3: #{tpu_custom_call.1} parent=1 // loop_header
      %s21 = sphi 0, %s25
      %p22 = scmp.ge.s32.totalorder %s21, 6
      %s28 = sphi 0, %s40
      %s29 = sphi 0, %s36
      %s30 = sphi 0, %s28
      %s31 = sphi 0, %s29
      %s32 = sphi 0, %s30
      %s33 = sphi 0, %s31
      %s45 = sphi 0, %s47
      %s48 = sphi 0, %s45
      %s49 = sphi 0, %s48
      %s65 = sphi 0, %s49
      %s69 = sphi 0, %s69
      %s71 = sphi 0, %s69
      %s72 = sphi 0, %s71
      %s86 = sphi 0, %s72
      %s90 = sphi 0, %s90
      %s92 = sphi 0, %s90
      %s93 = sphi 0, %s92
      %s107 = sphi 0, %s93
      %s113 = sphi 0, %s115
      %s116 = sphi 0, %s113
      %s117 = sphi 0, %s116
      %s133 = sphi 0, %s117
      %s137 = sphi 0, %s137
      %s139 = sphi 0, %s137
      %s140 = sphi 0, %s139
      %s154 = sphi 0, %s140
      %s158 = sphi 0, %s158
      %s160 = sphi 0, %s158
      %s161 = sphi 0, %s160
      %s175 = sphi 0, %s161
      %s179 = sphi 0, %s179
      %s181 = sphi 0, %s179
      %s182 = sphi 0, %s181
      %s196 = sphi 0, %s182
      %s200 = sphi 0, %s200
      %s202 = sphi 0, %s200
      %s203 = sphi 0, %s202
      %s217 = sphi 0, %s203
      %s225 = sphi 0, %s227
      %s228 = sphi 0, %s225
      %s229 = sphi 0, %s228
      %s245 = sphi 0, %s229
    $region4: #{tpu_custom_call.1} parent=1 // loop_header_branch
      %24 = sbr.rel (%p22) target = $region8
    $region5: #{tpu_custom_call.1} parent=1 // loop_body
      %s26 = ssub.s32 %s21, 1
      %s27 = ssub.s32 %s21, 2
      %s34 = sadd.s32 1, %s29
      %p35 = scmp.ge.s32.totalorder %s34, 2
      %s36 = scalar_select %p35, 0, %s34
      %s37 = sadd.s32 1, %s28
      %s38 = scalar_select %p35, %s37, %s28
      %p39 = scmp.ge.s32.totalorder %s38, 2
      %s40 = scalar_select %p39, 0, %s38
      %s41 = ssub.s32 %s28, %s40
      %s42 = ssub.s32 %s29, %s36
      %s43 = sor.u32 %s41, %s42
      %p44 = scmp.eq.s32.totalorder %s43, 0
      %s46 = sadd.s32 %s45, 1
      %s47 = scalar_select %p44, %s45, %s46
      %p50 = pneg %p44
      %p51 = scmp.eq.s32.totalorder %s21, 3
      %p52 = por %p50, %p51
      %p53 = scmp.ne.s32.totalorder %s45, %s48
      %p54 = scmp.eq.s32.totalorder %s21, 0
      %p55 = por %p53, %p54
      %p56 = scmp.ne.s32.totalorder %s45, %s48
      %p57 = scmp.eq.s32.totalorder %s26, 3
      %p58 = por %p56, %p57
      %p59 = scmp.ne.s32.totalorder %s48, %s49
      %p60 = scmp.eq.s32.totalorder %s26, 0
      %p61 = por %p59, %p60
      %p62 = scmp.ne.s32.totalorder %s48, %s49
      %p63 = scmp.eq.s32.totalorder %s27, 3
      %p64 = por %p62, %p63
      %p66 = scmp.ne.s32.totalorder %s49, %s65
      %p67 = scmp.eq.s32.totalorder %s27, 0
      %p68 = por %p66, %p67
      %s70 = sadd.s32 %s69, 1
      %p73 = scmp.eq.s32.totalorder %s21, 3
      %p74 = scmp.ne.s32.totalorder %s69, %s71
      %p75 = scmp.eq.s32.totalorder %s21, 0
      %p76 = por %p74, %p75
      %p77 = scmp.ne.s32.totalorder %s69, %s71
      %p78 = scmp.eq.s32.totalorder %s26, 3
      %p79 = por %p77, %p78
      %p80 = scmp.ne.s32.totalorder %s71, %s72
      %p81 = scmp.eq.s32.totalorder %s26, 0
      %p82 = por %p80, %p81
      %p83 = scmp.ne.s32.totalorder %s71, %s72
      %p84 = scmp.eq.s32.totalorder %s27, 3
      %p85 = por %p83, %p84
      %p87 = scmp.ne.s32.totalorder %s72, %s86
      %p88 = scmp.eq.s32.totalorder %s27, 0
      %p89 = por %p87, %p88
      %s91 = sadd.s32 %s90, 1
      %p94 = scmp.eq.s32.totalorder %s21, 3
      %p95 = scmp.ne.s32.totalorder %s90, %s92
      %p96 = scmp.eq.s32.totalorder %s21, 0
      %p97 = por %p95, %p96
      %p98 = scmp.ne.s32.totalorder %s90, %s92
      %p99 = scmp.eq.s32.totalorder %s26, 3
      %p100 = por %p98, %p99
      %p101 = scmp.ne.s32.totalorder %s92, %s93
      %p102 = scmp.eq.s32.totalorder %s26, 0
      %p103 = por %p101, %p102
      %p104 = scmp.ne.s32.totalorder %s92, %s93
      %p105 = scmp.eq.s32.totalorder %s27, 3
      %p106 = por %p104, %p105
      %p108 = scmp.ne.s32.totalorder %s93, %s107
      %p109 = scmp.eq.s32.totalorder %s27, 0
      %p110 = por %p108, %p109
      %s111 = ssub.s32 %s29, %s36
      %p112 = scmp.eq.s32.totalorder %s111, 0
      %s114 = sadd.s32 %s113, 1
      %s115 = scalar_select %p112, %s113, %s114
      %p118 = pneg %p112
      %p119 = scmp.eq.s32.totalorder %s21, 3
      %p120 = por %p118, %p119
      %p121 = scmp.ne.s32.totalorder %s113, %s116
      %p122 = scmp.eq.s32.totalorder %s21, 0
      %p123 = por %p121, %p122
      %p124 = scmp.ne.s32.totalorder %s113, %s116
      %p125 = scmp.eq.s32.totalorder %s26, 3
      %p126 = por %p124, %p125
      %p127 = scmp.ne.s32.totalorder %s116, %s117
      %p128 = scmp.eq.s32.totalorder %s26, 0
      %p129 = por %p127, %p128
      %p130 = scmp.ne.s32.totalorder %s116, %s117
      %p131 = scmp.eq.s32.totalorder %s27, 3
      %p132 = por %p130, %p131
      %p134 = scmp.ne.s32.totalorder %s117, %s133
      %p135 = scmp.eq.s32.totalorder %s27, 0
      %p136 = por %p134, %p135
      %s138 = sadd.s32 %s137, 1
      %p141 = scmp.eq.s32.totalorder %s21, 3
      %p142 = scmp.ne.s32.totalorder %s137, %s139
      %p143 = scmp.eq.s32.totalorder %s21, 0
      %p144 = por %p142, %p143
      %p145 = scmp.ne.s32.totalorder %s137, %s139
      %p146 = scmp.eq.s32.totalorder %s26, 3
      %p147 = por %p145, %p146
      %p148 = scmp.ne.s32.totalorder %s139, %s140
      %p149 = scmp.eq.s32.totalorder %s26, 0
      %p150 = por %p148, %p149
      %p151 = scmp.ne.s32.totalorder %s139, %s140
      %p152 = scmp.eq.s32.totalorder %s27, 3
      %p153 = por %p151, %p152
      %p155 = scmp.ne.s32.totalorder %s140, %s154
      %p156 = scmp.eq.s32.totalorder %s27, 0
      %p157 = por %p155, %p156
      %s159 = sadd.s32 %s158, 1
      %p162 = scmp.eq.s32.totalorder %s21, 3
      %p163 = scmp.ne.s32.totalorder %s158, %s160
      %p164 = scmp.eq.s32.totalorder %s21, 0
      %p165 = por %p163, %p164
      %p166 = scmp.ne.s32.totalorder %s158, %s160
      %p167 = scmp.eq.s32.totalorder %s26, 3
      %p168 = por %p166, %p167
      %p169 = scmp.ne.s32.totalorder %s160, %s161
      %p170 = scmp.eq.s32.totalorder %s26, 0
      %p171 = por %p169, %p170
      %p172 = scmp.ne.s32.totalorder %s160, %s161
      %p173 = scmp.eq.s32.totalorder %s27, 3
      %p174 = por %p172, %p173
      %p176 = scmp.ne.s32.totalorder %s161, %s175
      %p177 = scmp.eq.s32.totalorder %s27, 0
      %p178 = por %p176, %p177
      %s180 = sadd.s32 %s179, 1
      %p183 = scmp.eq.s32.totalorder %s21, 3
      %p184 = scmp.ne.s32.totalorder %s179, %s181
      %p185 = scmp.eq.s32.totalorder %s21, 0
      %p186 = por %p184, %p185
      %p187 = scmp.ne.s32.totalorder %s179, %s181
      %p188 = scmp.eq.s32.totalorder %s26, 3
      %p189 = por %p187, %p188
      %p190 = scmp.ne.s32.totalorder %s181, %s182
      %p191 = scmp.eq.s32.totalorder %s26, 0
      %p192 = por %p190, %p191
      %p193 = scmp.ne.s32.totalorder %s181, %s182
      %p194 = scmp.eq.s32.totalorder %s27, 3
      %p195 = por %p193, %p194
      %p197 = scmp.ne.s32.totalorder %s182, %s196
      %p198 = scmp.eq.s32.totalorder %s27, 0
      %p199 = por %p197, %p198
      %s201 = sadd.s32 %s200, 1
      %p204 = scmp.eq.s32.totalorder %s21, 3
      %p205 = scmp.ne.s32.totalorder %s200, %s202
      %p206 = scmp.eq.s32.totalorder %s21, 0
      %p207 = por %p205, %p206
      %p208 = scmp.ne.s32.totalorder %s200, %s202
      %p209 = scmp.eq.s32.totalorder %s26, 3
      %p210 = por %p208, %p209
      %p211 = scmp.ne.s32.totalorder %s202, %s203
      %p212 = scmp.eq.s32.totalorder %s26, 0
      %p213 = por %p211, %p212
      %p214 = scmp.ne.s32.totalorder %s202, %s203
      %p215 = scmp.eq.s32.totalorder %s27, 3
      %p216 = por %p214, %p215
      %p218 = scmp.ne.s32.totalorder %s203, %s217
      %p219 = scmp.eq.s32.totalorder %s27, 0
      %p220 = por %p218, %p219
      %s221 = ssub.s32 %s28, %s40
      %s222 = ssub.s32 %s29, %s36
      %s223 = sor.u32 %s221, %s222
      %p224 = scmp.eq.s32.totalorder %s223, 0
      %s226 = sadd.s32 %s225, 1
      %s227 = scalar_select %p224, %s225, %s226
      %p230 = pneg %p224
      %p231 = scmp.eq.s32.totalorder %s21, 3
      %p232 = por %p230, %p231
      %p233 = scmp.ne.s32.totalorder %s225, %s228
      %p234 = scmp.eq.s32.totalorder %s21, 0
      %p235 = por %p233, %p234
      %p236 = scmp.ne.s32.totalorder %s225, %s228
      %p237 = scmp.eq.s32.totalorder %s26, 3
      %p238 = por %p236, %p237
      %p239 = scmp.ne.s32.totalorder %s228, %s229
      %p240 = scmp.eq.s32.totalorder %s26, 0
      %p241 = por %p239, %p240
      %p242 = scmp.ne.s32.totalorder %s228, %s229
      %p243 = scmp.eq.s32.totalorder %s27, 3
      %p244 = por %p242, %p243
      %p246 = scmp.ne.s32.totalorder %s229, %s245
      %p247 = scmp.eq.s32.totalorder %s27, 0
      %p248 = por %p246, %p247
      %p249 = scmp.le.s32.totalorder 1, %s21
      %p250 = scmp.lt.s32.totalorder %s21, 5
      %p251 = pnand %p249, %p250
      %p252 = pneg %p251
      // Predicated region
      $region9: #{tpu_custom_call.1} parent=5 // pred_check
        _
      $region10: #{tpu_custom_call.1} parent=5 // pred_check_branch
        %254 = sbr.rel (%p251) target = $region12
      $region11: #{tpu_custom_call.1} parent=5 // pred_region
        %s255 = ssub.s32 %s21, 1
        // Predicated region
        $region13: #{tpu_custom_call.1} parent=11 // pred_check
          %p256 = pneg %p82
        $region14: #{tpu_custom_call.1} parent=11 // pred_check_branch
          %258 = sbr.rel (%p256) target = $region16
        $region15: #{tpu_custom_call.1} parent=11 // pred_region
          _
        $region16: #{tpu_custom_call.1} parent=11 // pred_fallthru
          _
        // Predicated region
        $region17: #{tpu_custom_call.1} parent=11 // pred_check
          %p259 = pneg %p103
        $region18: #{tpu_custom_call.1} parent=11 // pred_check_branch
          %261 = sbr.rel (%p259) target = $region20
        $region19: #{tpu_custom_call.1} parent=11 // pred_region
          %s263 = ssub.s32 288, 288
          %264 = vsyncadd [#allocation6], %s263
          %s265 = sshll.u32 [#allocation5], 4
          %s266 = int_to_ptr.vmem [resolvable:$true] %s265
          %271 = dma.hbm_to_vmem [thread:$0]  %s2, 288, %s266, [#allocation6], 32, 32, 2
        $region20: #{tpu_custom_call.1} parent=11 // pred_fallthru
          _
        // Predicated region
        $region21: #{tpu_custom_call.1} parent=11 // pred_check
          %p272 = pneg %p150
        $region22: #{tpu_custom_call.1} parent=11 // pred_check_branch
          %274 = sbr.rel (%p272) target = $region24
        $region23: #{tpu_custom_call.1} parent=11 // pred_region
          _
        $region24: #{tpu_custom_call.1} parent=11 // pred_fallthru
          _
        // Predicated region
        $region25: #{tpu_custom_call.1} parent=11 // pred_check
          %p275 = pneg %p171
        $region26: #{tpu_custom_call.1} parent=11 // pred_check_branch
          %277 = sbr.rel (%p275) target = $region28
        $region27: #{tpu_custom_call.1} parent=11 // pred_region
          _
        $region28: #{tpu_custom_call.1} parent=11 // pred_fallthru
          _
        // Predicated region
        $region29: #{tpu_custom_call.1} parent=11 // pred_check
          %p278 = pneg %p192
        $region30: #{tpu_custom_call.1} parent=11 // pred_check_branch
          %280 = sbr.rel (%p278) target = $region32
        $region31: #{tpu_custom_call.1} parent=11 // pred_region
          _
        $region32: #{tpu_custom_call.1} parent=11 // pred_fallthru
          _
        // Predicated region
        $region33: #{tpu_custom_call.1} parent=11 // pred_check
          %p281 = pneg %p213
        $region34: #{tpu_custom_call.1} parent=11 // pred_check_branch
          %283 = sbr.rel (%p281) target = $region36
        $region35: #{tpu_custom_call.1} parent=11 // pred_region
          _
        $region36: #{tpu_custom_call.1} parent=11 // pred_fallthru
          _
      $region12: #{tpu_custom_call.1} parent=5 // pred_fallthru
        _
      %p284 = scmp.lt.s32.totalorder %s21, 4
      // Predicated region
      $region37: #{tpu_custom_call.1} parent=5 // pred_check
        %p285 = pneg %p284
      $region38: #{tpu_custom_call.1} parent=5 // pred_check_branch
        %287 = sbr.rel (%p285) target = $region40
      $region39: #{tpu_custom_call.1} parent=5 // pred_region
        // Predicated region
        $region41: #{tpu_custom_call.1} parent=39 // pred_check
          %p288 = pneg %p55
        $region42: #{tpu_custom_call.1} parent=39 // pred_check_branch
          %290 = sbr.rel (%p288) target = $region44
        $region43: #{tpu_custom_call.1} parent=39 // pred_region
          %s291 = sand.u32 %s21, 1
          %s292 = scalar_lea.sflag [#allocation3], %s291
          %s293 = sand.u32 %s45, 1
          %s294 = smul.addr %s293, 16
          %s295 = scalar_lea.vmem [#allocation2], %s294
          %s297 = ssub.s32 256, 256
          %298 = vsyncadd %s292, %s297
          %s299 = smul.addr %s29, 2
          %s300 = smul.addr %s28, 4
          %s301 = sadd.s32 %s299, %s300
          %s302 = smul.addr %s301, 128
          %s303 = scalar_lea.hbm %s0, %s302
          %s305 = sshll.u32 %s295, 4
          %s306 = int_to_ptr.vmem [resolvable:$true] %s305
          %308 = dma.hbm_to_vmem [thread:$0]  %s303, 256, %s306, %s292
        $region44: #{tpu_custom_call.1} parent=39 // pred_fallthru
          _
        // Predicated region
        $region45: #{tpu_custom_call.1} parent=39 // pred_check
          %p309 = pneg %p123
        $region46: #{tpu_custom_call.1} parent=39 // pred_check_branch
          %311 = sbr.rel (%p309) target = $region48
        $region47: #{tpu_custom_call.1} parent=39 // pred_region
          %s312 = sand.u32 %s21, 1
          %s313 = scalar_lea.sflag [#allocation3], %s312
          %s314 = sand.u32 %s113, 1
          %s315 = smul.addr %s314, 2
          %s316 = scalar_lea.vmem [#allocation7], %s315
          %s318 = ssub.s32 32, 32
          %319 = vsyncadd %s313, %s318
          %s320 = smul.addr %s29, 2
          %s321 = smul.addr %s320, 16
          %s322 = scalar_lea.hbm %s3, %s321
          %s324 = sshll.u32 %s316, 4
          %s325 = int_to_ptr.vmem [resolvable:$true] %s324
          %327 = dma.hbm_to_vmem [thread:$0]  %s322, 32, %s325, %s313
        $region48: #{tpu_custom_call.1} parent=39 // pred_fallthru
          _
      $region40: #{tpu_custom_call.1} parent=5 // pred_fallthru
        _
      %p328 = scmp.le.s32.totalorder 1, %s21
      %p329 = scmp.lt.s32.totalorder %s21, 5
      %p330 = pnand %p328, %p329
      %p331 = pneg %p330
      // Predicated region
      $region49: #{tpu_custom_call.1} parent=5 // pred_check
        _
      $region50: #{tpu_custom_call.1} parent=5 // pred_check_branch
        %333 = sbr.rel (%p330) target = $region52
      $region51: #{tpu_custom_call.1} parent=5 // pred_region
        %s334 = ssub.s32 %s21, 1
        %s335 = sand.u32 %s26, 1
        %s336 = scalar_lea.sflag [#allocation3], %s335
        %s337 = sand.u32 %s48, 1
        %s338 = smul.addr %s337, 16
        %s339 = scalar_lea.vmem [#allocation2], %s338
        // Predicated region
        $region53: #{tpu_custom_call.1} parent=51 // pred_check
          %p340 = pneg %p61
        $region54: #{tpu_custom_call.1} parent=51 // pred_check_branch
          %342 = sbr.rel (%p340) target = $region56
        $region55: #{tpu_custom_call.1} parent=51 // pred_region
          %343 = dma.done %s336, 256
        $region56: #{tpu_custom_call.1} parent=51 // pred_fallthru
          _
        // Predicated region
        $region57: #{tpu_custom_call.1} parent=51 // pred_check
          %p344 = pneg %p103
        $region58: #{tpu_custom_call.1} parent=51 // pred_check_branch
          %346 = sbr.rel (%p344) target = $region60
        $region59: #{tpu_custom_call.1} parent=51 // pred_region
          %347 = dma.done [#allocation6], 288
        $region60: #{tpu_custom_call.1} parent=51 // pred_fallthru
          _
        %s348 = sand.u32 %s26, 1
        %s349 = scalar_lea.sflag [#allocation3], %s348
        %s350 = sand.u32 %s116, 1
        %s351 = smul.addr %s350, 2
        %s352 = scalar_lea.vmem [#allocation7], %s351
        // Predicated region
        $region61: #{tpu_custom_call.1} parent=51 // pred_check
          %p353 = pneg %p129
        $region62: #{tpu_custom_call.1} parent=51 // pred_check_branch
          %355 = sbr.rel (%p353) target = $region64
        $region63: #{tpu_custom_call.1} parent=51 // pred_region
          %356 = dma.done %s349, 32
        $region64: #{tpu_custom_call.1} parent=51 // pred_fallthru
          _
        %s357 = sand.u32 %s26, 1
        %s358 = scalar_lea.sflag [#allocation3], %s357
        %s359 = sand.u32 %s48, 1
        %s360 = smul.addr %s359, 16
        %s361 = scalar_lea.vmem [#allocation2], %s360
        %p362 = pneg %p61
        %p363 = pneg %p58
        %p364 = pneg %p82
        %p365 = pneg %p79
        %p366 = pneg %p103
        %p367 = pneg %p100
        %s368 = sand.u32 %s26, 1
        %s369 = scalar_lea.sflag [#allocation3], %s368
        %s370 = sand.u32 %s116, 1
        %s371 = smul.addr %s370, 2
        %s372 = scalar_lea.vmem [#allocation7], %s371
        %p373 = pneg %p129
        %p374 = pneg %p126
        %p375 = pneg %p150
        %p376 = pneg %p147
        %p377 = pneg %p171
        %p378 = pneg %p168
        %p379 = pneg %p192
        %p380 = pneg %p189
        %p381 = pneg %p213
        %p382 = pneg %p210
        %p383 = pneg %p241
        %p384 = pneg %p238
        %s385 = sand.u32 %s228, 1
        %s386 = scalar_lea.sflag [#allocation4], %s385
        %s387 = sand.u32 %s228, 1
        %s388 = smul.addr %s387, 8
        %s389 = scalar_lea.vmem [#allocation8], %s388
        %v390 = vld [vmem:[%s339] sm:$0xff]
        %v391 = vld [vmem:[%s339 + $0x8] sm:$0xff]
        %393 = vrot.lane.b32.xlu0 %v391, 81
        %v394 = vpop.permute.xlu0 %393
        %397 = vrot.lane.b32.xlu0 %v390, 17
        %v398 = vpop.permute.xlu0 %397
        %399 = vrot.lane.b32.xlu0 %v391, 17
        %v400 = vpop.permute.xlu0 %399
        %vm401 = vcmask 138240
        %v402 = vsel %vm401, %v398, %v400
        %v405 = vsel %vm401, %v394, %v398
        %v406 = vld [vmem:[%s1] sm:$0x3]
        %v408 = vlaneseq
        %v409 = vshrl.u32 %v408, 7
        %v410 = vsub.s32 0, %v409
        %v411 = vrot.slane %v406, %v410
        %v412 = vlaneseq
        %v413 = vshrl.u32 %v412, 7
        %v414 = vsub.s32 1, %v413
        %v415 = vrot.slane %v406, %v414
        %v418 = vmul.f32 %v405, %v411
        %v419 = vmul.f32 %v402, %v415
        %420 = vrot.lane.b32.xlu0 %v391, 80
        %v421 = vpop.permute.xlu0 %420
        %423 = vrot.lane.b32.xlu0 %v390, 16
        %v424 = vpop.permute.xlu0 %423
        %425 = vrot.lane.b32.xlu0 %v391, 16
        %v426 = vpop.permute.xlu0 %425
        %vm427 = vcmask 130048
        %v428 = vsel %vm427, %v424, %v426
        %v431 = vsel %vm427, %v421, %v424
        %432 = vrot.lane.b32.xlu0 %v391, 79
        %v433 = vpop.permute.xlu0 %432
        %435 = vrot.lane.b32.xlu0 %v390, 15
        %v436 = vpop.permute.xlu0 %435
        %437 = vrot.lane.b32.xlu0 %v391, 15
        %v438 = vpop.permute.xlu0 %437
        %vm439 = vcmask 121856
        %v440 = vsel %vm439, %v436, %v438
        %v443 = vsel %vm439, %v433, %v436
        %s444 = scalar_lea.vmem %s1, 4
        %v445 = vld [vmem:[%s444] sm:$0x3]
        %v447 = vlaneseq
        %v448 = vshrl.u32 %v447, 7
        %v449 = vsub.s32 0, %v448
        %v450 = vrot.slane %v445, %v449
        %v451 = vlaneseq
        %v452 = vshrl.u32 %v451, 7
        %v453 = vsub.s32 1, %v452
        %v454 = vrot.slane %v445, %v453
        %v457 = vmul.f32 %v443, %v450
        %v458 = vmul.f32 %v440, %v454
        %459 = vrot.lane.b32.xlu0 %v391, 65
        %v460 = vpop.permute.xlu0 %459
        %462 = vrot.lane.b32.xlu0 %v390, 1
        %v463 = vpop.permute.xlu0 %462
        %464 = vrot.lane.b32.xlu0 %v391, 1
        %v465 = vpop.permute.xlu0 %464
        %vm466 = vcmask 7168
        %v467 = vsel %vm466, %v463, %v465
        %v470 = vsel %vm466, %v460, %v463
        %s471 = scalar_lea.vmem %s1, 6
        %v472 = vld [vmem:[%s471] sm:$0x3]
        %v474 = vlaneseq
        %v475 = vshrl.u32 %v474, 7
        %v476 = vsub.s32 0, %v475
        %v477 = vrot.slane %v472, %v476
        %v478 = vlaneseq
        %v479 = vshrl.u32 %v478, 7
        %v480 = vsub.s32 1, %v479
        %v481 = vrot.slane %v472, %v480
        %v484 = vmul.f32 %v470, %v477
        %v485 = vmul.f32 %v467, %v481
        %486 = vrot.lane.b32.xlu0 %v390, 127
        %v487 = vpop.permute.xlu0 %486
        %488 = vrot.lane.b32.xlu0 %v391, 127
        %v489 = vpop.permute.xlu0 %488
        %vm490 = vcmask 1039360
        %v491 = vsel %vm490, %v487, %v489
        %494 = vrot.lane.b32.xlu0 %v390, 63
        %v495 = vpop.permute.xlu0 %494
        %vm497 = vcmask 515072
        %v498 = vsel %vm497, %v489, %v495
        %s499 = scalar_lea.vmem %s1, 10
        %v500 = vld [vmem:[%s499] sm:$0x3]
        %v502 = vlaneseq
        %v503 = vshrl.u32 %v502, 7
        %v504 = vsub.s32 0, %v503
        %v505 = vrot.slane %v500, %v504
        %v506 = vlaneseq
        %v507 = vshrl.u32 %v506, 7
        %v508 = vsub.s32 1, %v507
        %v509 = vrot.slane %v500, %v508
        %v512 = vmul.f32 %v491, %v505
        %v513 = vmul.f32 %v498, %v509
        %514 = vrot.lane.b32.xlu0 %v390, 113
        %v515 = vpop.permute.xlu0 %514
        %516 = vrot.lane.b32.xlu0 %v391, 113
        %v517 = vpop.permute.xlu0 %516
        %vm518 = vcmask 924672
        %v519 = vsel %vm518, %v515, %v517
        %522 = vrot.lane.b32.xlu0 %v390, 49
        %v523 = vpop.permute.xlu0 %522
        %vm525 = vcmask 400384
        %v526 = vsel %vm525, %v517, %v523
        %s527 = scalar_lea.vmem %s1, 12
        %v528 = vld [vmem:[%s527] sm:$0x3]
        %v530 = vlaneseq
        %v531 = vshrl.u32 %v530, 7
        %v532 = vsub.s32 0, %v531
        %v533 = vrot.slane %v528, %v532
        %v534 = vlaneseq
        %v535 = vshrl.u32 %v534, 7
        %v536 = vsub.s32 1, %v535
        %v537 = vrot.slane %v528, %v536
        %v540 = vmul.f32 %v519, %v533
        %v541 = vmul.f32 %v526, %v537
        %542 = vrot.lane.b32.xlu0 %v390, 112
        %v543 = vpop.permute.xlu0 %542
        %544 = vrot.lane.b32.xlu0 %v391, 112
        %v545 = vpop.permute.xlu0 %544
        %vm546 = vcmask 916480
        %v547 = vsel %vm546, %v543, %v545
        %550 = vrot.lane.b32.xlu0 %v390, 48
        %v551 = vpop.permute.xlu0 %550
        %vm553 = vcmask 392192
        %v554 = vsel %vm553, %v545, %v551
        %555 = vrot.lane.b32.xlu0 %v390, 111
        %v556 = vpop.permute.xlu0 %555
        %557 = vrot.lane.b32.xlu0 %v391, 111
        %v558 = vpop.permute.xlu0 %557
        %vm559 = vcmask 908288
        %v560 = vsel %vm559, %v556, %v558
        %563 = vrot.lane.b32.xlu0 %v390, 47
        %v564 = vpop.permute.xlu0 %563
        %vm566 = vcmask 384000
        %v567 = vsel %vm566, %v558, %v564
        %s568 = scalar_lea.vmem %s1, 16
        %v569 = vld [vmem:[%s568] sm:$0x3]
        %v571 = vlaneseq
        %v572 = vshrl.u32 %v571, 7
        %v573 = vsub.s32 0, %v572
        %v574 = vrot.slane %v569, %v573
        %v575 = vlaneseq
        %v576 = vshrl.u32 %v575, 7
        %v577 = vsub.s32 1, %v576
        %v578 = vrot.slane %v569, %v577
        %v581 = vmul.f32 %v560, %v574
        %v582 = vmul.f32 %v567, %v578
        %v583 = vld [vmem:[%s4] sm:$0xff]
        %vm584 = vcmask 588800
        %v586 = vsel %vm584, %v583, 0
        %588 = vmatprep.subr.mxu0 %v419
        %589 = vmatpush1.msra.mxu0 %v418
        %590 = vmatprep.subr.mxu0 %v428
        %591 = vmatpush1.msra.mxu0 %v431
        %592 = vmatprep.subr.mxu0 %v458
        %593 = vmatpush1.msra.mxu0 %v457
        %594 = vmatprep.subr.mxu0 %v485
        %595 = vmatpush1.msra.mxu0 %v484
        %596 = vmatprep.subr.mxu0 %v391
        %597 = vmatpush1.msra.mxu0 %v390
        %598 = vmatprep.subr.mxu0 %v513
        %599 = vmatpush1.msra.mxu0 %v512
        %600 = vmatprep.subr.mxu0 %v541
        %601 = vmatpush1.msra.mxu0 %v540
        %602 = vmatprep.subr.mxu0 %v554
        %603 = vmatpush1.msra.mxu0 %v547
        %604 = vmatprep.subr.mxu0 %v582
        %605 = vmatpush1.msra.mxu0 %v581
        %606 = vmatprep.subr.mxu0 0.0
        %607 = vmatpush1.msra.mxu0 0.0
        %608 = vmatprep.subr.mxu0 0.0
        %609 = vmatpush1.msra.mxu0 0.0
        %610 = vmatprep.subr.mxu0 0.0
        %611 = vmatpush1.msra.mxu0 0.0
        %612 = vmatprep.subr.mxu0 0.0
        %613 = vmatpush1.msra.mxu0 0.0
        %614 = vmatprep.subr.mxu0 0.0
        %615 = vmatpush1.msra.mxu0 0.0
        %616 = vmatprep.subr.mxu0 0.0
        %617 = vmatpush1.msra.mxu0 0.0
        %618 = vmatprep.subr.mxu0 0.0
        %619 = vmatpush1.msra.mxu0 0.0
        %620 = vmatprep.subr.mxu0 0.0
        %621 = vmatpush1.msra.mxu0 0.0
        %622 = vmatprep.subr.mxu0 0.0
        %623 = vmatpush1.msra.mxu0 0.0
        %624 = vmatprep.subr.mxu0 0.0
        %625 = vmatpush1.msra.mxu0 0.0
        %626 = vmatprep.subr.mxu0 0.0
        %627 = vmatpush1.msra.mxu0 0.0
        %628 = vmatprep.subr.mxu0 0.0
        %629 = vmatpush1.msra.mxu0 0.0
        %630 = vmatprep.subr.mxu0 0.0
        %631 = vmatpush1.msra.mxu0 0.0
        %632 = vmatprep.subr.mxu0 0.0
        %633 = vmatpush1.msra.mxu0 0.0
        %634 = vmatprep.subr.mxu0 0.0
        %635 = vmatpush1.msra.mxu0 0.0
        %636 = vmatprep.subr.mxu0 0.0
        %637 = vmatpush1.msra.mxu0 0.0
        %638 = vmatprep.subr.mxu0 0.0
        %639 = vmatpush1.msra.mxu0 0.0
        %640 = vmatprep.subr.mxu0 0.0
        %641 = vmatpush1.msra.mxu0 0.0
        %642 = vmatprep.subr.mxu0 0.0
        %643 = vmatpush1.msra.mxu0 0.0
        %644 = vmatprep.subr.mxu0 0.0
        %645 = vmatpush1.msra.mxu0 0.0
        %646 = vmatprep.subr.mxu0 0.0
        %647 = vmatpush1.msra.mxu0 0.0
        %648 = vmatprep.subr.mxu0 0.0
        %649 = vmatpush1.msra.mxu0 0.0
        %650 = vmatprep.subr.mxu0 0.0
        %651 = vmatpush1.msra.mxu0 0.0
        %652 = vmatprep.mubr.f32.mxu0 0.0
        %653 = vmatmul.mubr.f32.gmra.mrb[0].mxu0 %v586
        %v654 = vpop.f32.mrb[0].mxu0
        %v655 = vadd.f32 0.0, %v654
        %v656 = vpop.f32.mrb[0].mxu0
        %v657 = vadd.f32 0.0, %v656
        %658 = vdwg.mxu0
        %v659 = vld [vmem:[%s5] sm:$0xff]
        %661 = vset.pattern.permute.xlu0 0
        %662 = vperm.xlu0 %661, %v659
        %v663 = vpop.permute.xlu0 %662
        %v665 = vadd.f32 %v655, %v663
        %v666 = vadd.f32 %v657, %v663
        %v667 = vmax.f32 %v665, 0.0
        %v668 = vmax.f32 %v666, 0.0
        %v669 = vld [vmem:[%s352] sm:$0x3]
        %v671 = vlaneseq
        %v672 = vshrl.u32 %v671, 7
        %v673 = vsub.s32 0, %v672
        %v674 = vrot.slane %v669, %v673
        %v675 = vlaneseq
        %v676 = vshrl.u32 %v675, 7
        %v677 = vsub.s32 1, %v676
        %v678 = vrot.slane %v669, %v677
        %679 = vrot.lane.b32.xlu0 %v674, 16
        %v680 = vpop.permute.xlu0 %679
        %681 = vrot.lane.b32.xlu0 %v678, 16
        %v682 = vpop.permute.xlu0 %681
        %v683 = vsel %vm427, %v680, %v682
        %v686 = vmul.f32 %v667, %v680
        %v687 = vmul.f32 %v668, %v683
        %689 = vrot.lane.b32.xlu0 %v687, 97
        %v690 = vpop.permute.xlu0 %689
        %693 = vrot.lane.b32.xlu0 %v686, 1
        %v694 = vpop.permute.xlu0 %693
        %695 = vrot.lane.b32.xlu0 %v687, 1
        %v696 = vpop.permute.xlu0 %695
        %v697 = vsel %vm466, %v694, %v696
        %v700 = vsel %vm401, %v690, %v694
        %v701 = vld [vmem:[#allocation5] sm:$0x3]
        %v703 = vlaneseq
        %v704 = vshrl.u32 %v703, 7
        %v705 = vsub.s32 0, %v704
        %v706 = vrot.slane %v701, %v705
        %v707 = vlaneseq
        %v708 = vshrl.u32 %v707, 7
        %v709 = vsub.s32 1, %v708
        %v710 = vrot.slane %v701, %v709
        %v713 = vmul.f32 %v700, %v706
        %v714 = vmul.f32 %v697, %v710
        %715 = vrot.lane.b32.xlu0 %v687, 96
        %v716 = vpop.permute.xlu0 %715
        %v718 = vsel %vm427, %v716, %v686
        %719 = vrot.lane.b32.xlu0 %v687, 95
        %v720 = vpop.permute.xlu0 %719
        %722 = vrot.lane.b32.xlu0 %v686, 127
        %v723 = vpop.permute.xlu0 %722
        %724 = vrot.lane.b32.xlu0 %v687, 127
        %v725 = vpop.permute.xlu0 %724
        %v726 = vsel %vm490, %v723, %v725
        %v729 = vsel %vm439, %v720, %v726
        %s730 = scalar_lea.vmem [#allocation5], 4
        %v731 = vld [vmem:[%s730] sm:$0x3]
        %v733 = vlaneseq
        %v734 = vshrl.u32 %v733, 7
        %v735 = vsub.s32 0, %v734
        %v736 = vrot.slane %v731, %v735
        %v737 = vlaneseq
        %v738 = vshrl.u32 %v737, 7
        %v739 = vsub.s32 1, %v738
        %v740 = vrot.slane %v731, %v739
        %v743 = vmul.f32 %v729, %v736
        %v744 = vmul.f32 %v725, %v740
        %745 = vrot.lane.b32.xlu0 %v687, 81
        %v746 = vpop.permute.xlu0 %745
        %748 = vrot.lane.b32.xlu0 %v686, 113
        %v749 = vpop.permute.xlu0 %748
        %750 = vrot.lane.b32.xlu0 %v687, 113
        %v751 = vpop.permute.xlu0 %750
        %v752 = vsel %vm518, %v749, %v751
        %v755 = vsel %vm466, %v746, %v752
        %s756 = scalar_lea.vmem [#allocation5], 6
        %v757 = vld [vmem:[%s756] sm:$0x3]
        %v759 = vlaneseq
        %v760 = vshrl.u32 %v759, 7
        %v761 = vsub.s32 0, %v760
        %v762 = vrot.slane %v757, %v761
        %v763 = vlaneseq
        %v764 = vshrl.u32 %v763, 7
        %v765 = vsub.s32 1, %v764
        %v766 = vrot.slane %v757, %v765
        %v769 = vmul.f32 %v755, %v762
        %v770 = vmul.f32 %v751, %v766
        %771 = vrot.lane.b32.xlu0 %v686, 111
        %v772 = vpop.permute.xlu0 %771
        %773 = vrot.lane.b32.xlu0 %v687, 111
        %v774 = vpop.permute.xlu0 %773
        %v775 = vsel %vm559, %v772, %v774
        %778 = vrot.lane.b32.xlu0 %v686, 15
        %v779 = vpop.permute.xlu0 %778
        %vm781 = vcmask 252928
        %v782 = vsel %vm781, %v774, %v779
        %s783 = scalar_lea.vmem [#allocation5], 10
        %v784 = vld [vmem:[%s783] sm:$0x3]
        %v786 = vlaneseq
        %v787 = vshrl.u32 %v786, 7
        %v788 = vsub.s32 0, %v787
        %v789 = vrot.slane %v784, %v788
        %v790 = vlaneseq
        %v791 = vshrl.u32 %v790, 7
        %v792 = vsub.s32 1, %v791
        %v793 = vrot.slane %v784, %v792
        %v796 = vmul.f32 %v775, %v789
        %v797 = vmul.f32 %v782, %v793
        %798 = vrot.lane.b32.xlu0 %v686, 97
        %v799 = vpop.permute.xlu0 %798
        %vm800 = vcmask 793600
        %v801 = vsel %vm800, %v799, %v690
        %s803 = scalar_lea.vmem [#allocation5], 12
        %v804 = vld [vmem:[%s803] sm:$0x3]
        %v806 = vlaneseq
        %v807 = vshrl.u32 %v806, 7
        %v808 = vsub.s32 0, %v807
        %v809 = vrot.slane %v804, %v808
        %v810 = vlaneseq
        %v811 = vshrl.u32 %v810, 7
        %v812 = vsub.s32 1, %v811
        %v813 = vrot.slane %v804, %v812
        %v816 = vmul.f32 %v801, %v809
        %v817 = vmul.f32 %v700, %v813
        %818 = vrot.lane.b32.xlu0 %v686, 96
        %v819 = vpop.permute.xlu0 %818
        %vm820 = vcmask 785408
        %v821 = vsel %vm820, %v819, %v716
        %823 = vrot.lane.b32.xlu0 %v686, 95
        %v824 = vpop.permute.xlu0 %823
        %vm825 = vcmask 777216
        %v826 = vsel %vm825, %v824, %v720
        %v829 = vsel %vm439, %v720, %v723
        %s830 = scalar_lea.vmem [#allocation5], 16
        %v831 = vld [vmem:[%s830] sm:$0x3]
        %v833 = vlaneseq
        %v834 = vshrl.u32 %v833, 7
        %v835 = vsub.s32 0, %v834
        %v836 = vrot.slane %v831, %v835
        %v837 = vlaneseq
        %v838 = vshrl.u32 %v837, 7
        %v839 = vsub.s32 1, %v838
        %v840 = vrot.slane %v831, %v839
        %v843 = vmul.f32 %v826, %v836
        %v844 = vmul.f32 %v829, %v840
        %845 = vrot.lane.b32.xlu0 %v686, 112
        %v846 = vpop.permute.xlu0 %845
        %847 = vrot.lane.b32.xlu0 %v687, 112
        %v848 = vpop.permute.xlu0 %847
        %v849 = vsel %vm546, %v846, %v848
        %v852 = vld [vmem:[%s6] sm:$0xff]
        %v854 = vsel %vm584, %v852, 0
        %856 = vmatprep.subr.mxu0 %v714
        %857 = vmatpush1.msra.mxu0 %v713
        %858 = vmatprep.subr.mxu0 %v687
        %859 = vmatpush1.msra.mxu0 %v718
        %860 = vmatprep.subr.mxu0 %v744
        %861 = vmatpush1.msra.mxu0 %v743
        %862 = vmatprep.subr.mxu0 %v770
        %863 = vmatpush1.msra.mxu0 %v769
        %864 = vmatprep.subr.mxu0 %v848
        %865 = vmatpush1.msra.mxu0 %v849
        %866 = vmatprep.subr.mxu0 %v797
        %867 = vmatpush1.msra.mxu0 %v796
        %868 = vmatprep.subr.mxu0 %v817
        %869 = vmatpush1.msra.mxu0 %v816
        %870 = vmatprep.subr.mxu0 %v718
        %871 = vmatpush1.msra.mxu0 %v821
        %872 = vmatprep.subr.mxu0 %v844
        %873 = vmatpush1.msra.mxu0 %v843
        %874 = vmatprep.subr.mxu0 0.0
        %875 = vmatpush1.msra.mxu0 0.0
        %876 = vmatprep.subr.mxu0 0.0
        %877 = vmatpush1.msra.mxu0 0.0
        %878 = vmatprep.subr.mxu0 0.0
        %879 = vmatpush1.msra.mxu0 0.0
        %880 = vmatprep.subr.mxu0 0.0
        %881 = vmatpush1.msra.mxu0 0.0
        %882 = vmatprep.subr.mxu0 0.0
        %883 = vmatpush1.msra.mxu0 0.0
        %884 = vmatprep.subr.mxu0 0.0
        %885 = vmatpush1.msra.mxu0 0.0
        %886 = vmatprep.subr.mxu0 0.0
        %887 = vmatpush1.msra.mxu0 0.0
        %888 = vmatprep.subr.mxu0 0.0
        %889 = vmatpush1.msra.mxu0 0.0
        %890 = vmatprep.subr.mxu0 0.0
        %891 = vmatpush1.msra.mxu0 0.0
        %892 = vmatprep.subr.mxu0 0.0
        %893 = vmatpush1.msra.mxu0 0.0
        %894 = vmatprep.subr.mxu0 0.0
        %895 = vmatpush1.msra.mxu0 0.0
        %896 = vmatprep.subr.mxu0 0.0
        %897 = vmatpush1.msra.mxu0 0.0
        %898 = vmatprep.subr.mxu0 0.0
        %899 = vmatpush1.msra.mxu0 0.0
        %900 = vmatprep.subr.mxu0 0.0
        %901 = vmatpush1.msra.mxu0 0.0
        %902 = vmatprep.subr.mxu0 0.0
        %903 = vmatpush1.msra.mxu0 0.0
        %904 = vmatprep.subr.mxu0 0.0
        %905 = vmatpush1.msra.mxu0 0.0
        %906 = vmatprep.subr.mxu0 0.0
        %907 = vmatpush1.msra.mxu0 0.0
        %908 = vmatprep.subr.mxu0 0.0
        %909 = vmatpush1.msra.mxu0 0.0
        %910 = vmatprep.subr.mxu0 0.0
        %911 = vmatpush1.msra.mxu0 0.0
        %912 = vmatprep.subr.mxu0 0.0
        %913 = vmatpush1.msra.mxu0 0.0
        %914 = vmatprep.subr.mxu0 0.0
        %915 = vmatpush1.msra.mxu0 0.0
        %916 = vmatprep.subr.mxu0 0.0
        %917 = vmatpush1.msra.mxu0 0.0
        %918 = vmatprep.subr.mxu0 0.0
        %919 = vmatpush1.msra.mxu0 0.0
        %920 = vmatprep.mubr.f32.mxu0 0.0
        %921 = vmatmul.mubr.f32.gmra.mrb[0].mxu0 %v854
        %v922 = vpop.f32.mrb[0].mxu0
        %v923 = vadd.f32 0.0, %v922
        %v924 = vpop.f32.mrb[0].mxu0
        %v925 = vadd.f32 0.0, %v924
        %926 = vdwg.mxu0
        %v927 = vld [vmem:[%s7] sm:$0xff]
        %929 = vset.pattern.permute.xlu0 0
        %930 = vperm.xlu0 %929, %v927
        %v931 = vpop.permute.xlu0 %930
        %v933 = vadd.f32 %v923, %v931
        %v934 = vadd.f32 %v925, %v931
        %v935 = vadd.f32 %v933, %v547
        %v936 = vadd.f32 %v934, %v545
        %v937 = vmax.f32 %v935, 0.0
        %v938 = vmax.f32 %v936, 0.0
        %941 = vrot.lane.b32.xlu0 %v937, 112
        %v942 = vpop.permute.xlu0 %941
        %943 = vrot.lane.b32.xlu0 %v938, 112
        %v944 = vpop.permute.xlu0 %943
        %v945 = vsel %vm546, %v942, %v944
        %947 = vst [vmem:[%s389] sm:$0xff] %v945
        %s948 = sand.u32 %s228, 1
        %s949 = scalar_lea.sflag [#allocation4], %s948
        %s950 = sand.u32 %s228, 1
        %s951 = smul.addr %s950, 8
        %s952 = scalar_lea.vmem [#allocation8], %s951
        // Predicated region
        $region65: #{tpu_custom_call.1} parent=51 // pred_check
          %p953 = pneg %p238
        $region66: #{tpu_custom_call.1} parent=51 // pred_check_branch
          %955 = sbr.rel (%p953) target = $region68
        $region67: #{tpu_custom_call.1} parent=51 // pred_region
          %s957 = ssub.s32 128, 128
          %958 = vsyncadd %s949, %s957
          %s959 = smul.addr %s30, 2
          %s960 = sadd.s32 %s31, %s959
          %s961 = smul.addr %s960, 128
          %s962 = scalar_lea.hbm %s8, %s961
          %s964 = sshll.u32 %s952, 4
          %s965 = int_to_ptr.vmem [resolvable:$true] %s964
          %967 = dma.vmem_to_hbm [thread:$0]  %s965, 128, %s962, %s949
        $region68: #{tpu_custom_call.1} parent=51 // pred_fallthru
          _
      $region52: #{tpu_custom_call.1} parent=5 // pred_fallthru
        _
      %p968 = scmp.le.s32.totalorder 2, %s21
      // Predicated region
      $region69: #{tpu_custom_call.1} parent=5 // pred_check
        %p969 = pneg %p968
      $region70: #{tpu_custom_call.1} parent=5 // pred_check_branch
        %971 = sbr.rel (%p969) target = $region72
      $region71: #{tpu_custom_call.1} parent=5 // pred_region
        %s972 = ssub.s32 %s21, 2
        // Predicated region
        $region73: #{tpu_custom_call.1} parent=71 // pred_check
          %p973 = pneg %p244
        $region74: #{tpu_custom_call.1} parent=71 // pred_check_branch
          %975 = sbr.rel (%p973) target = $region76
        $region75: #{tpu_custom_call.1} parent=71 // pred_region
          %s976 = sand.u32 %s229, 1
          %s977 = scalar_lea.sflag [#allocation4], %s976
          %s978 = sand.u32 %s229, 1
          %s979 = smul.addr %s978, 8
          %s980 = scalar_lea.vmem [#allocation8], %s979
          %981 = dma.done %s977, 128
        $region76: #{tpu_custom_call.1} parent=71 // pred_fallthru
          _
      $region72: #{tpu_custom_call.1} parent=5 // pred_fallthru
        _
    $region6: #{tpu_custom_call.1} parent=1 // loop_footer
      %s25 = sadd.s32 1, %s21
    $region7: #{tpu_custom_call.1} parent=1 // loop_footer_branch
      %20 = sbr.rel target = $region3
    $region8: #{tpu_custom_call.1} parent=1 // loop_exit
      _
    %982 = vsyncpa [#allocation3], 1
    %s983 = scalar_lea.sflag [#allocation3], 1
    %984 = vsyncpa %s983, 1
    %985 = vsyncpa [#allocation6], 1
    %986 = vsyncpa [#allocation4], 1
    %s987 = scalar_lea.sflag [#allocation4], 1
    %988 = vsyncpa %s987, 1

</llo_original>
